<compile_context>
chip_gen: v6e
topology: v6e:2x2x1
jax: 0.10.0
libtpu: 0.0.40
codegen_flags: <defaults>
</compile_context>

<pallas_src>
import jax
import jax.numpy as jnp
from jax.experimental import pallas as pl
from jax.experimental.pallas import tpu as pltpu


# ---------------------------------------------------------------------------
# Kernel: pass the current VMEM tile through the (empty) layer stack.
# ---------------------------------------------------------------------------
def _identity_kernel(x_ref, o_ref):
    o_ref[...] = x_ref[...]


_LANES = 1024                  # lane-dense last dim (large multiple of 128)
_BLOCK_ROWS = 512              # 512 x 1024 x 4B = 2 MiB per f32 tile
_SINGLE_BLOCK_BYTES = 4 << 20  # arrays <= 4 MiB go through the one-block path


def model_forward(x):
    """Forward of the empty-Sequential model (identity of x).

    Note: the truly optimal path is simply `return x` (zero HBM traffic); this
    function runs the Pallas identity kernel so the kernel path is exercised
    and can later host real compute for a non-empty nn.Sequential.
    """
    orig_shape = x.shape
    dtype = x.dtype
    n = x.size
    if n == 0:
        return x

    nbytes = n * jnp.dtype(dtype).itemsize

    # --- small path: whole array as a single full-dims VMEM block ---------
    if nbytes <= _SINGLE_BLOCK_BYTES:
        x_in = x if x.ndim >= 2 else x.reshape(1, -1)
        block = x_in.shape
        zero_idx = (0,) * len(block)
        out = pl.pallas_call(
            _identity_kernel,
            out_shape=jax.ShapeDtypeStruct(x_in.shape, dtype),
            in_specs=[pl.BlockSpec(block, lambda *_: zero_idx)],
            out_specs=pl.BlockSpec(block, lambda *_: zero_idx),
        )(x_in)
        return out.reshape(orig_shape)

    # --- large path: lane-dense 2-D slab, big tiles, parallel grid --------
    rows = -(-n // _LANES)                                 # cdiv(n, _LANES)
    padded_rows = -(-rows // _BLOCK_ROWS) * _BLOCK_ROWS    # multiple of 512
    flat = x.reshape(-1)
    pad = padded_rows * _LANES - n
    if pad:
        flat = jnp.pad(flat, (0, pad))
    x2d = flat.reshape(padded_rows, _LANES)

    out2d = pl.pallas_call(
        _identity_kernel,
        out_shape=jax.ShapeDtypeStruct(x2d.shape, dtype),
        grid=(padded_rows // _BLOCK_ROWS,),
        in_specs=[pl.BlockSpec((_BLOCK_ROWS, _LANES), lambda i: (i, 0))],
        out_specs=pl.BlockSpec((_BLOCK_ROWS, _LANES), lambda i: (i, 0)),
        compiler_params=pltpu.CompilerParams(
            dimension_semantics=("parallel",)
        ),
    )(x2d)

    return out2d.reshape(-1)[:n].reshape(orig_shape)


if __name__ == "__main__":
    # Small shapes consistent with the module's constructor arguments.
    batch = 2
    input_length = 8
    pred_length = 4   # unused by the (empty) forward, kept for fidelity
    data_dim = 32

    key = jax.random.PRNGKey(0)
    x = jax.random.normal(key, (batch, input_length, data_dim), dtype=jnp.float32)

    out = jax.block_until_ready(model_forward(x))

    # Sanity check: empty nn.Sequential == identity.
    assert out.shape == x.shape
    assert out.dtype == x.dtype
    assert jnp.array_equal(out, x)

    print("KERNEL_OK")
</pallas_src>

<mosaic_0001>
module attributes {stable_mosaic.version = 11 : i64} {
  func.func @_identity_kernel(%arg0: memref<2x8x32xf32, #tpu.memory_space<vmem>>, %arg1: memref<2x8x32xf32, #tpu.memory_space<vmem>>) attributes {dimension_semantics = [], scalar_prefetch = 0 : i64, scratch_operands = 0 : i64, tpu.core_type = #tpu.core_type<tc>} {
    %c0 = arith.constant 0 : index
    %c0_0 = arith.constant 0 : index
    %c0_1 = arith.constant 0 : index
    %0 = vector.load %arg0[%c0, %c0_0, %c0_1] : memref<2x8x32xf32, #tpu.memory_space<vmem>>, vector<2x8x32xf32>
    %c0_2 = arith.constant 0 : index
    %c0_3 = arith.constant 0 : index
    %c0_4 = arith.constant 0 : index
    %1 = vector.load %arg1[%c0_2, %c0_3, %c0_4] : memref<2x8x32xf32, #tpu.memory_space<vmem>>, vector<2x8x32xf32>
    tpu.vector_store %arg1[%c0_2, %c0_3, %c0_4], %0 {strides = array<i32>} : memref<2x8x32xf32, #tpu.memory_space<vmem>>, vector<2x8x32xf32>,
    return
  }
}

</mosaic_0001>

<llo_original>
// kernel: tpu_custom_call.1
$region0: #{tpu_custom_call.1}
  #allocation0 [shape = 'u32[]', space=smem, size = 0x4, offset = 0x4, fixed_abs, tag = 'smem constant byte address 0x4 - core index']
  #allocation1 [shape = 'u32[144,128]{1,0:T(1,128)}', space=vmem, size = 0x12000, scoped, tag = 'internal scratch']
  %s0 = inlined_call_operand.hbm [shape: f32[2,8,32], index: 0, kind: input, shape index: {}]
  %s1 = inlined_call_operand.hbm [shape: f32[2,8,32], index: 1, kind: output, shape index: {}]
  %s2 = sld [smem:[#allocation0]]
  $region18: #{tpu_custom_call.1} parent=0
    _
  %s4 = ssub.s32 1, %s2
  %s5 = scalar_select 0, %s4, %s2
  $region1: #{tpu_custom_call.1} parent=0
    #allocation2 [shape = 'u8[8192]{0}', space=vmem, size = 0x2000, scoped, tag = 'input window, operand 0, single buffered']
    #allocation3 [shape = 's32[1]{0}', space=sflag, size = 0x4, scoped, tag = 'scoped memory for tpu_custom_call.1']
    #allocation4 [shape = 's32[1]{0}', space=sflag, size = 0x4, scoped, tag = 'scoped memory for tpu_custom_call.1']
    #allocation5 [shape = 'u8[8192]{0}', space=vmem, size = 0x2000, scoped, tag = 'output window, operand 0, single buffered']
    %6 = vsyncpa [#allocation3], 0
    %7 = vsyncpa [#allocation4], 0
    // Predicated region
    $region2: #{tpu_custom_call.1} parent=1 // pred_check
      _
    $region3: #{tpu_custom_call.1} parent=1 // pred_check_branch
      %9 = sbr.rel (0) target = $region5
    $region4: #{tpu_custom_call.1} parent=1 // pred_region
      %s11 = ssub.s32 256, 256
      %12 = vsyncadd [#allocation3], %s11
      %s13 = sshll.u32 [#allocation2], 4
      %s14 = int_to_ptr.vmem [resolvable:$true] %s13
      %19 = dma.hbm_to_vmem [thread:$0]  %s0, 256, %s14, [#allocation3], 128, 128, 8
    $region5: #{tpu_custom_call.1} parent=1 // pred_fallthru
      _
    // Predicated region
    $region6: #{tpu_custom_call.1} parent=1 // pred_check
      _
    $region7: #{tpu_custom_call.1} parent=1 // pred_check_branch
      %21 = sbr.rel (0) target = $region9
    $region8: #{tpu_custom_call.1} parent=1 // pred_region
      %22 = dma.done [#allocation3], 256
    $region9: #{tpu_custom_call.1} parent=1 // pred_fallthru
      _
    %v23 = vld [vmem:[#allocation2] sm:$0xff]
    %v24 = vld [vmem:[#allocation2 + $0x8] sm:$0xff]
    %vm25 = vcmask 261120
    %26 = vst.msk [vmem:[#allocation5] sm:$0xff] %vm25, %v23
    %27 = vst.msk [vmem:[#allocation5 + $0x8] sm:$0xff] %vm25, %v24
    // Predicated region
    $region10: #{tpu_custom_call.1} parent=1 // pred_check
      _
    $region11: #{tpu_custom_call.1} parent=1 // pred_check_branch
      %29 = sbr.rel (0) target = $region13
    $region12: #{tpu_custom_call.1} parent=1 // pred_region
      %s31 = ssub.s32 256, 256
      %32 = vsyncadd [#allocation4], %s31
      %s33 = sshll.u32 [#allocation5], 4
      %s34 = int_to_ptr.vmem [resolvable:$true] %s33
      %39 = dma.vmem_to_hbm [thread:$0]  %s34, 256, %s1, [#allocation4], 128, 128, 8
    $region13: #{tpu_custom_call.1} parent=1 // pred_fallthru
      _
    // Predicated region
    $region14: #{tpu_custom_call.1} parent=1 // pred_check
      _
    $region15: #{tpu_custom_call.1} parent=1 // pred_check_branch
      %41 = sbr.rel (0) target = $region17
    $region16: #{tpu_custom_call.1} parent=1 // pred_region
      %42 = dma.done [#allocation4], 256
    $region17: #{tpu_custom_call.1} parent=1 // pred_fallthru
      _
    %43 = vsyncpa [#allocation3], 1
    %44 = vsyncpa [#allocation4], 1

</llo_original>
